<compile_context>
chip_gen: v7x
topology: tpu7x:2x2x1
jax: 0.10.0
libtpu: 0.0.40
codegen_flags: <defaults>
</compile_context>

<pallas_src>
import numpy as np
import jax
import jax.numpy as jnp
from jax.experimental import pallas as pl
from jax.experimental.pallas import tpu as pltpu

FILTER_SIZE = 5
THRESHOLD_LOW = 0.1
THRESHOLD_UP = 0.5      # > THRESHOLD_LOW, so it never changes the 'thick' (no-NMS) mask
K = 1.5
NORM = 16.971           # ~= 12*sqrt(2): max 3-channel Sobel magnitude for inputs in [0,1]
SCALE = K / NORM        # folded constant: single multiply in the kernel


def _gaussian_1d(filter_size=FILTER_SIZE, std=1.0):
    n = np.arange(filter_size, dtype=np.float64) - (filter_size - 1) / 2.0
    w = np.exp(-(n ** 2) / (2.0 * std ** 2))
    return w / w.sum()  # normalized Gaussian blur taps (deterministic init)


GAUSS = _gaussian_1d()
SOBEL_X = np.array([[1., 0., -1.],
                    [2., 0., -2.],
                    [1., 0., -1.]], dtype=np.float64)   # horizontal Sobel
SOBEL_Y = SOBEL_X.T                                     # vertical Sobel


def _conv_matrix_left(n, taps):
    """L such that (L @ img) applies the 1-D correlation `taps` (zero-padded) along rows."""
    r = (len(taps) - 1) // 2
    L = np.zeros((n, n), np.float64)
    for k, t in enumerate(taps):
        for i in range(n):
            m = i + k - r
            if 0 <= m < n:
                L[i, m] += t
    return L


def _conv_matrix_right(n, taps):
    """R such that (img @ R) applies the 1-D correlation `taps` (zero-padded) along columns."""
    return _conv_matrix_left(n, taps).T


def _kron_operator(H, W):
    """Fold Gauss blur + separable Sobel into one (H*W, 2*H*W) flattened operator.

    gx = A1 @ X @ Bx and gy = A2 @ X @ By  (zero-padded correlations), so with
    row-major vec:  vec(gx) = vec(X) @ kron(A1^T, Bx),  vec(gy) = vec(X) @ kron(A2^T, By).
    """
    gv = _conv_matrix_left(H, GAUSS)                    # vertical Gaussian  (rows)
    gh = _conv_matrix_right(W, GAUSS)                   # horizontal Gaussian (cols)
    a1 = _conv_matrix_left(H, [1., 2., 1.]) @ gv        # rows: [1,2,1] o Gaussian
    a2 = _conv_matrix_left(H, [1., 0., -1.]) @ gv       # rows: [1,0,-1] o Gaussian
    bx = gh @ _conv_matrix_right(W, [1., 0., -1.])      # cols: Gaussian o [1,0,-1]
    by = gh @ _conv_matrix_right(W, [1., 2., 1.])       # cols: Gaussian o [1,2,1]
    lx = np.kron(a1.T, bx)                              # (H*W, H*W)
    ly = np.kron(a2.T, by)                              # (H*W, H*W)
    return np.concatenate([lx, ly], axis=1).astype(np.float32)   # (H*W, 2*H*W)


def canny_smooth_tar_kernel(l_ref, x_ref, o_ref):
    # l_ref: (HW, 2*HW) bf16 constant; x_ref: (bt, C*HW) bf16; o_ref: (bt, HW) f32.
    bt, chw = x_ref.shape
    hw = o_ref.shape[-1]
    C = chw // hw

    L = l_ref[...]                 # constant block; DMA elided after first step
    x = x_ref[...]                 # single block-wide load

    grad = jnp.zeros((bt, hw), jnp.float32)
    for c in range(C):             # static, C == 3
        xc = x[:, c * hw:(c + 1) * hw]                       # lane-aligned slice
        g = jnp.dot(xc, L, preferred_element_type=jnp.float32)   # single-pass bf16 MXU, f32 acc
        gx = g[:, :hw]
        gy = g[:, hw:]
        grad = grad + jnp.sqrt(gx * gx + gy * gy)            # per-channel magnitude, summed

    # 'thickbianyuan' mask: weak edges (>= low) are kept, so the >= up test is
    # redundant (THRESHOLD_UP > THRESHOLD_LOW). Mask multiply fused into the select.
    # TODO(synk): connectivity-based hysteresis edge tracking of the original
    # CannyDetector has no clean Pallas equivalent; omitted (weak edges kept).
    o_ref[...] = jnp.where(grad >= THRESHOLD_LOW,
                           jnp.minimum(grad * SCALE, 1.0), 0.0)   # torch.clamp(., max=1)


def _choose_batch_tile(B, C, HW, itemsize=2, block_budget=2 << 20):
    """Batch-tile (multiple of 8 sublanes) and step count. >=2 steps when B>=2 (v7x megacore)."""
    bt = max(8, (block_budget // (C * HW * itemsize)) // 8 * 8)
    if B >= 2:
        bt = min(bt, max(8, (((B + 1) // 2) + 7) // 8 * 8))
        num_steps = max(2, -(-B // bt))
    else:
        num_steps = 1
    bt = ((-(-B // num_steps)) + 7) // 8 * 8      # shrink tile to minimize padded tail
    return bt, num_steps


@jax.jit
def get_adaptive_smooth_tar(x):
    B, C, H, W = x.shape
    assert C == 3, "CannyDetector expects an RGB (3-channel) image"
    HW = H * W
    # TODO(synk): frames with H*W > 4096 need a halo'd row-strip stencil path
    # (the dense Kronecker operator grows as (H*W)^2); not implemented here.
    assert HW <= 4096, "dense Kronecker path only supports small frames"

    # Trace-time constants (depend only on H, W); bf16 operands, f32 accumulation.
    L = jnp.asarray(_kron_operator(H, W), dtype=jnp.bfloat16)        # (HW, 2*HW)

    xf = x.reshape(B, C * HW).astype(jnp.bfloat16)                   # lane-dense NCHW flatten
    bt, num_steps = _choose_batch_tile(B, C, HW)
    Bp = bt * num_steps
    if Bp != B:
        xf = jnp.pad(xf, ((0, Bp - B), (0, 0)))                      # zero rows -> zero output

    out = pl.pallas_call(
        canny_smooth_tar_kernel,
        out_shape=jax.ShapeDtypeStruct((Bp, HW), jnp.float32),
        grid_spec=pltpu.PrefetchScalarGridSpec(
            num_scalar_prefetch=0,
            grid=(num_steps,),
            in_specs=[
                pl.BlockSpec((HW, 2 * HW), lambda i: (0, 0)),        # constant operator
                pl.BlockSpec((bt, C * HW), lambda i: (i, 0)),        # batch strip of images
            ],
            out_specs=pl.BlockSpec((bt, HW), lambda i: (i, 0)),      # lane-dense output slab
        ),
        compiler_params=pltpu.CompilerParams(
            dimension_semantics=("parallel",),        # shard batch strips across TCs on v7x
            vmem_limit_bytes=32 * 1024 * 1024,        # safe on v5e/v6e/v7x; >= double-buffered blocks
        ),
    )(L, xf)

    return out[:B].reshape(B, 1, H, W)


def reference(x):
    """Pure-JAX tap-by-tap f32 reference with the PyTorch module's math (sanity check)."""
    B, C, H, W = x.shape
    xp = jnp.pad(x, ((0, 0), (0, 0), (0, 0), (2, 2)))
    bh = sum(float(GAUSS[t]) * xp[..., :, t:t + W] for t in range(FILTER_SIZE))
    bp = jnp.pad(bh, ((0, 0), (0, 0), (2, 2), (0, 0)))
    bl = sum(float(GAUSS[t]) * bp[..., t:t + H, :] for t in range(FILTER_SIZE))
    sp = jnp.pad(bl, ((0, 0), (0, 0), (1, 1), (1, 1)))
    gx = sum(float(SOBEL_X[a, b]) * sp[..., a:a + H, b:b + W]
             for a in range(3) for b in range(3) if SOBEL_X[a, b] != 0.0)
    gy = sum(float(SOBEL_Y[a, b]) * sp[..., a:a + H, b:b + W]
             for a in range(3) for b in range(3) if SOBEL_Y[a, b] != 0.0)
    grad = jnp.sqrt(gx * gx + gy * gy).sum(axis=1, keepdims=True)
    mask = jnp.where(grad >= THRESHOLD_LOW, 1.0, 0.0)
    return jnp.minimum(grad * mask * SCALE, 1.0), grad


if __name__ == "__main__":
    key = jax.random.PRNGKey(0)
    # Small RGB image batch in [0,1], NCHW like the PyTorch module.
    x = jax.random.uniform(key, (2, 3, 16, 16), dtype=jnp.float32)

    out = jax.block_until_ready(get_adaptive_smooth_tar(x))
    assert out.shape == (2, 1, 16, 16) and out.dtype == jnp.float32

    ref, grad_ref = reference(x)
    ref = np.asarray(jax.block_until_ready(ref))
    grad_ref = np.asarray(grad_ref)
    diff = np.abs(np.asarray(out) - ref)
    # bf16 operands (f32 accumulate) shift the gradient by O(1e-2); pixels whose
    # gradient sits near the 0.1 threshold can flip the binary mask, so exclude
    # that band from the strict elementwise check and use a bf16-sized tolerance
    # elsewhere (a flip near the threshold changes the output by < SCALE*0.15 anyway).
    near_threshold = np.abs(grad_ref - THRESHOLD_LOW) < 5e-2
    assert np.all((diff <= 2e-2) | near_threshold), float(diff.max())
    print("KERNEL_OK")
</pallas_src>

<mosaic_0001>
module attributes {stable_mosaic.version = 11 : i64} {
  func.func @canny_smooth_tar_kernel(%arg0: i32, %arg1: memref<256x512xbf16, #tpu.memory_space<vmem>>, %arg2: memref<8x768xbf16, #tpu.memory_space<vmem>>, %arg3: memref<8x256xf32, #tpu.memory_space<vmem>>) attributes {dimension_semantics = [#tpu.dimension_semantics<parallel>], iteration_bounds = array<i64: 2>, scalar_prefetch = 0 : i64, scratch_operands = 0 : i64, tpu.core_type = #tpu.core_type<tc>, window_params = [{pipeline_mode = #tpu.pipeline_mode<synchronous>, transform_indices = @transform_0, window_bounds = array<i64: 256, 512>}, {transform_indices = @transform_1, window_bounds = array<i64: 8, 768>}, {transform_indices = @transform_2, window_bounds = array<i64: 8, 256>}]} {
    %c0 = arith.constant 0 : index
    %c0_0 = arith.constant 0 : index
    %0 = vector.load %arg1[%c0, %c0_0] : memref<256x512xbf16, #tpu.memory_space<vmem>>, vector<256x512xbf16>
    %c0_1 = arith.constant 0 : index
    %c0_2 = arith.constant 0 : index
    %1 = vector.load %arg2[%c0_1, %c0_2] : memref<8x768xbf16, #tpu.memory_space<vmem>>, vector<8x768xbf16>
    %cst = arith.constant 0.000000e+00 : f32
    %2 = vector.broadcast %cst : f32 to vector<8x256xf32>
    %3 = vector.extract_strided_slice %1 {offsets = [0, 0], sizes = [8, 256], strides = [1, 1]} : vector<8x768xbf16> to vector<8x256xbf16>
    %cst_3 = arith.constant dense<0.000000e+00> : vector<8x512xf32>
    %4 = tpu.matmul %3, %0, %cst_3 {dimension_numbers = #tpu.dot_dimension_numbers<[1], [0], [0], [1], [0, 0, 1, 1], [], []>} : vector<8x256xbf16>, vector<256x512xbf16>, vector<8x512xf32> -> vector<8x512xf32>
    %5 = vector.extract_strided_slice %4 {offsets = [0, 0], sizes = [8, 256], strides = [1, 1]} : vector<8x512xf32> to vector<8x256xf32>
    %6 = vector.extract_strided_slice %4 {offsets = [0, 256], sizes = [8, 256], strides = [1, 1]} : vector<8x512xf32> to vector<8x256xf32>
    %7 = arith.mulf %5, %5 : vector<8x256xf32>
    %8 = arith.mulf %6, %6 : vector<8x256xf32>
    %9 = arith.addf %7, %8 : vector<8x256xf32>
    %10 = math.sqrt %9 : vector<8x256xf32>
    %11 = arith.addf %2, %10 : vector<8x256xf32>
    %12 = vector.extract_strided_slice %1 {offsets = [0, 256], sizes = [8, 256], strides = [1, 1]} : vector<8x768xbf16> to vector<8x256xbf16>
    %cst_4 = arith.constant dense<0.000000e+00> : vector<8x512xf32>
    %13 = tpu.matmul %12, %0, %cst_4 {dimension_numbers = #tpu.dot_dimension_numbers<[1], [0], [0], [1], [0, 0, 1, 1], [], []>} : vector<8x256xbf16>, vector<256x512xbf16>, vector<8x512xf32> -> vector<8x512xf32>
    %14 = vector.extract_strided_slice %13 {offsets = [0, 0], sizes = [8, 256], strides = [1, 1]} : vector<8x512xf32> to vector<8x256xf32>
    %15 = vector.extract_strided_slice %13 {offsets = [0, 256], sizes = [8, 256], strides = [1, 1]} : vector<8x512xf32> to vector<8x256xf32>
    %16 = arith.mulf %14, %14 : vector<8x256xf32>
    %17 = arith.mulf %15, %15 : vector<8x256xf32>
    %18 = arith.addf %16, %17 : vector<8x256xf32>
    %19 = math.sqrt %18 : vector<8x256xf32>
    %20 = arith.addf %11, %19 : vector<8x256xf32>
    %21 = vector.extract_strided_slice %1 {offsets = [0, 512], sizes = [8, 256], strides = [1, 1]} : vector<8x768xbf16> to vector<8x256xbf16>
    %cst_5 = arith.constant dense<0.000000e+00> : vector<8x512xf32>
    %22 = tpu.matmul %21, %0, %cst_5 {dimension_numbers = #tpu.dot_dimension_numbers<[1], [0], [0], [1], [0, 0, 1, 1], [], []>} : vector<8x256xbf16>, vector<256x512xbf16>, vector<8x512xf32> -> vector<8x512xf32>
    %23 = vector.extract_strided_slice %22 {offsets = [0, 0], sizes = [8, 256], strides = [1, 1]} : vector<8x512xf32> to vector<8x256xf32>
    %24 = vector.extract_strided_slice %22 {offsets = [0, 256], sizes = [8, 256], strides = [1, 1]} : vector<8x512xf32> to vector<8x256xf32>
    %25 = arith.mulf %23, %23 : vector<8x256xf32>
    %26 = arith.mulf %24, %24 : vector<8x256xf32>
    %27 = arith.addf %25, %26 : vector<8x256xf32>
    %28 = math.sqrt %27 : vector<8x256xf32>
    %29 = arith.addf %20, %28 : vector<8x256xf32>
    %cst_6 = arith.constant 1.000000e-01 : f32
    %30 = vector.broadcast %cst_6 : f32 to vector<8x256xf32>
    %31 = arith.cmpf oge, %29, %30 : vector<8x256xf32>
    %cst_7 = arith.constant 0.0883860737 : f32
    %32 = vector.broadcast %cst_7 : f32 to vector<8x256xf32>
    %33 = arith.mulf %29, %32 : vector<8x256xf32>
    %cst_8 = arith.constant 1.000000e+00 : f32
    %34 = vector.broadcast %cst_8 : f32 to vector<8x256xf32>
    %35 = arith.minimumf %33, %34 : vector<8x256xf32>
    %cst_9 = arith.constant 0.000000e+00 : f32
    %36 = vector.broadcast %cst_9 : f32 to vector<8x256xf32>
    %37 = arith.select %31, %35, %36 : vector<8x256xi1>, vector<8x256xf32>
    %c0_10 = arith.constant 0 : index
    %c0_11 = arith.constant 0 : index
    %38 = vector.load %arg3[%c0_10, %c0_11] : memref<8x256xf32, #tpu.memory_space<vmem>>, vector<8x256xf32>
    tpu.vector_store %arg3[%c0_10, %c0_11], %37 {strides = array<i32>} : memref<8x256xf32, #tpu.memory_space<vmem>>, vector<8x256xf32>,
    return
  }
  func.func @transform_0(%arg0: i32) -> (i32, i32) {
    %c0_i32 = arith.constant 0 : i32
    %c0_i32_0 = arith.constant 0 : i32
    %c0_i32_1 = arith.constant 0 : i32
    return %c0_i32, %c0_i32_0 : i32, i32
  }
  func.func @transform_1(%arg0: i32) -> (i32, i32) {
    %c0_i32 = arith.constant 0 : i32
    %c0_i32_0 = arith.constant 0 : i32
    return %arg0, %c0_i32 : i32, i32
  }
  func.func @transform_2(%arg0: i32) -> (i32, i32) {
    %c0_i32 = arith.constant 0 : i32
    %c0_i32_0 = arith.constant 0 : i32
    return %arg0, %c0_i32 : i32, i32
  }
}

</mosaic_0001>

<llo_original>
// kernel: get_adaptive_smooth_tar.1
$region0: #{get_adaptive_smooth_tar.1}
  #allocation0 [shape = 'u32[]', space=smem, size = 0x4, offset = 0x4, fixed_abs, tag = 'smem constant byte address 0x4 - core index']
  #allocation1 [shape = 'u32[144,128]{1,0:T(1,128)}', space=vmem, size = 0x12000, scoped, tag = 'internal scratch']
  %s0 = inlined_call_operand.vmem [shape: bf16[256,512], index: 0, kind: input, shape index: {}]
  %s1 = inlined_call_operand.vmem [shape: bf16[16,768], index: 1, kind: input, shape index: {}]
  %s2 = inlined_call_operand.vmem [shape: f32[16,256], index: 2, kind: output, shape index: {}]
  %s3 = sld [smem:[#allocation0]]
  $region41: #{get_adaptive_smooth_tar.1} parent=0
    _
  %s5 = ssub.s32 1, %s3
  %s6 = scalar_select 0, %s5, %s3
  loop: start=0, step=1, limit=4
  $region2: #{get_adaptive_smooth_tar.1} parent=0 // loop_pre_header
    _
  $region3: #{get_adaptive_smooth_tar.1} parent=0 // loop_header
    %s8 = sphi 0, %s12
    %p9 = scmp.ge.s32.totalorder %s8, 4
    %s16 = sphi 0, %s16
    %s18 = sphi 0, %s16
    %s19 = sphi 0, %s18
    %s33 = sphi 0, %s19
    %s39 = sphi 0, %s41
    %s42 = sphi 0, %s39
    %s43 = sphi 0, %s42
    %s59 = sphi 0, %s43
    %s65 = sphi 0, %s67
    %s68 = sphi 0, %s65
    %s69 = sphi 0, %s68
    %s85 = sphi 0, %s69
  $region4: #{get_adaptive_smooth_tar.1} parent=0 // loop_header_branch
    %11 = sbr.rel (%p9) target = $region8
  $region5: #{get_adaptive_smooth_tar.1} parent=0 // loop_body
    %s13 = ssub.s32 %s8, 1
    %s14 = ssub.s32 %s8, 2
    %s15 = sadd.s32 %s8, 1
    %s17 = sadd.s32 %s16, 1
    %p20 = scmp.eq.s32.totalorder %s8, 1
    %p21 = scmp.ne.s32.totalorder %s16, %s18
    %p22 = scmp.eq.s32.totalorder %s8, 0
    %p23 = por %p21, %p22
    %p24 = scmp.ne.s32.totalorder %s16, %s18
    %p25 = scmp.eq.s32.totalorder %s13, 1
    %p26 = por %p24, %p25
    %p27 = scmp.ne.s32.totalorder %s18, %s19
    %p28 = scmp.eq.s32.totalorder %s13, 0
    %p29 = por %p27, %p28
    %p30 = scmp.ne.s32.totalorder %s18, %s19
    %p31 = scmp.eq.s32.totalorder %s14, 1
    %p32 = por %p30, %p31
    %p34 = scmp.ne.s32.totalorder %s19, %s33
    %p35 = scmp.eq.s32.totalorder %s14, 0
    %p36 = por %p34, %p35
    %s37 = ssub.s32 %s8, %s15
    %p38 = scmp.eq.s32.totalorder %s37, 0
    %s40 = sadd.s32 %s39, 1
    %s41 = scalar_select %p38, %s39, %s40
    %p44 = pneg %p38
    %p45 = scmp.eq.s32.totalorder %s8, 1
    %p46 = por %p44, %p45
    %p47 = scmp.ne.s32.totalorder %s39, %s42
    %p48 = scmp.eq.s32.totalorder %s8, 0
    %p49 = por %p47, %p48
    %p50 = scmp.ne.s32.totalorder %s39, %s42
    %p51 = scmp.eq.s32.totalorder %s13, 1
    %p52 = por %p50, %p51
    %p53 = scmp.ne.s32.totalorder %s42, %s43
    %p54 = scmp.eq.s32.totalorder %s13, 0
    %p55 = por %p53, %p54
    %p56 = scmp.ne.s32.totalorder %s42, %s43
    %p57 = scmp.eq.s32.totalorder %s14, 1
    %p58 = por %p56, %p57
    %p60 = scmp.ne.s32.totalorder %s43, %s59
    %p61 = scmp.eq.s32.totalorder %s14, 0
    %p62 = por %p60, %p61
    %s63 = ssub.s32 %s8, %s15
    %p64 = scmp.eq.s32.totalorder %s63, 0
    %s66 = sadd.s32 %s65, 1
    %s67 = scalar_select %p64, %s65, %s66
    %p70 = pneg %p64
    %p71 = scmp.eq.s32.totalorder %s8, 1
    %p72 = por %p70, %p71
    %p73 = scmp.ne.s32.totalorder %s65, %s68
    %p74 = scmp.eq.s32.totalorder %s8, 0
    %p75 = por %p73, %p74
    %p76 = scmp.ne.s32.totalorder %s65, %s68
    %p77 = scmp.eq.s32.totalorder %s13, 1
    %p78 = por %p76, %p77
    %p79 = scmp.ne.s32.totalorder %s68, %s69
    %p80 = scmp.eq.s32.totalorder %s13, 0
    %p81 = por %p79, %p80
    %p82 = scmp.ne.s32.totalorder %s68, %s69
    %p83 = scmp.eq.s32.totalorder %s14, 1
    %p84 = por %p82, %p83
    %p86 = scmp.ne.s32.totalorder %s69, %s85
    %p87 = scmp.eq.s32.totalorder %s14, 0
    %p88 = por %p86, %p87
    %p89 = scmp.le.s32.totalorder 1, %s8
    %p90 = scmp.lt.s32.totalorder %s8, 3
    %p91 = pnand %p89, %p90
    %p92 = pneg %p91
    // Predicated region
    $region9: #{get_adaptive_smooth_tar.1} parent=5 // pred_check
      _
    $region10: #{get_adaptive_smooth_tar.1} parent=5 // pred_check_branch
      %94 = sbr.rel (%p91) target = $region12
    $region11: #{get_adaptive_smooth_tar.1} parent=5 // pred_region
      %s95 = ssub.s32 %s8, 1
      // Predicated region
      $region13: #{get_adaptive_smooth_tar.1} parent=11 // pred_check
        %p96 = pneg %p29
      $region14: #{get_adaptive_smooth_tar.1} parent=11 // pred_check_branch
        %98 = sbr.rel (%p96) target = $region16
      $region15: #{get_adaptive_smooth_tar.1} parent=11 // pred_region
        _
      $region16: #{get_adaptive_smooth_tar.1} parent=11 // pred_fallthru
        _
    $region12: #{get_adaptive_smooth_tar.1} parent=5 // pred_fallthru
      _
    %p99 = scmp.lt.s32.totalorder %s8, 2
    // Predicated region
    $region17: #{get_adaptive_smooth_tar.1} parent=5 // pred_check
      %p100 = pneg %p99
    $region18: #{get_adaptive_smooth_tar.1} parent=5 // pred_check_branch
      %102 = sbr.rel (%p100) target = $region20
    $region19: #{get_adaptive_smooth_tar.1} parent=5 // pred_region
      // Predicated region
      $region21: #{get_adaptive_smooth_tar.1} parent=19 // pred_check
        %p103 = pneg %p49
      $region22: #{get_adaptive_smooth_tar.1} parent=19 // pred_check_branch
        %105 = sbr.rel (%p103) target = $region24
      $region23: #{get_adaptive_smooth_tar.1} parent=19 // pred_region
        %p106 = scmp.lt.s32.totalorder %s8, 1
        %s107 = scalar_select %p106, %s8, 1
        %s108 = smul.addr %s107, 6
        %s109 = smul.addr %s108, 4
        %s110 = scalar_lea.vmem %s1, %s109
      $region24: #{get_adaptive_smooth_tar.1} parent=19 // pred_fallthru
        _
    $region20: #{get_adaptive_smooth_tar.1} parent=5 // pred_fallthru
      _
    %p111 = scmp.le.s32.totalorder 1, %s8
    %p112 = scmp.lt.s32.totalorder %s8, 3
    %p113 = pnand %p111, %p112
    %p114 = pneg %p113
    // Predicated region
    $region25: #{get_adaptive_smooth_tar.1} parent=5 // pred_check
      _
    $region26: #{get_adaptive_smooth_tar.1} parent=5 // pred_check_branch
      %116 = sbr.rel (%p113) target = $region28
    $region27: #{get_adaptive_smooth_tar.1} parent=5 // pred_region
      %s117 = ssub.s32 %s8, 1
      %p118 = pneg %p29
      %p119 = pneg %p26
      %p120 = scmp.lt.s32.totalorder %s13, 1
      %s121 = scalar_select %p120, %s13, 1
      %s122 = smul.addr %s121, 6
      %s123 = smul.addr %s122, 4
      %s124 = scalar_lea.vmem %s1, %s123
      %p125 = pneg %p55
      %p126 = pneg %p52
      %p127 = pneg %p81
      %p128 = pneg %p78
      %p129 = scmp.lt.s32.totalorder %s13, 1
      %s130 = scalar_select %p129, %s13, 1
      %s131 = smul.addr %s130, 2
      %s132 = smul.addr %s131, 8
      %s133 = scalar_lea.vmem %s2, %s132
      %p134 = scmp.lt.s32.totalorder %s13, 1
      %s135 = scalar_select %p134, %s13, 1
      %s136 = smul.addr %s135, 6
      %s137 = smul.addr %s136, 4
      %s138 = scalar_lea.vmem %s1, %s137
      %p139 = scmp.lt.s32.totalorder %s13, 1
      %s140 = scalar_select %p139, %s13, 1
      %s141 = smul.addr %s140, 2
      %s142 = smul.addr %s141, 8
      %s143 = scalar_lea.vmem %s2, %s142
      %v144 = vld [vmem:[%s0] sm:$0xff]
      %v145 = vld [vmem:[%s0 + $0x8] sm:$0xff]
      %v146 = vld [vmem:[%s0 + $0x10] sm:$0xff]
      %v147 = vld [vmem:[%s0 + $0x18] sm:$0xff]
      %v148 = vld [vmem:[%s0 + $0x20] sm:$0xff]
      %v149 = vld [vmem:[%s0 + $0x28] sm:$0xff]
      %v150 = vld [vmem:[%s0 + $0x30] sm:$0xff]
      %v151 = vld [vmem:[%s0 + $0x38] sm:$0xff]
      %v152 = vld [vmem:[%s0 + $0x40] sm:$0xff]
      %v153 = vld [vmem:[%s0 + $0x48] sm:$0xff]
      %v154 = vld [vmem:[%s0 + $0x50] sm:$0xff]
      %v155 = vld [vmem:[%s0 + $0x58] sm:$0xff]
      %v156 = vld [vmem:[%s0 + $0x60] sm:$0xff]
      %v157 = vld [vmem:[%s0 + $0x68] sm:$0xff]
      %v158 = vld [vmem:[%s0 + $0x70] sm:$0xff]
      %v159 = vld [vmem:[%s0 + $0x78] sm:$0xff]
      %v160 = vld [vmem:[%s0 + $0x80] sm:$0xff]
      %v161 = vld [vmem:[%s0 + $0x88] sm:$0xff]
      %v162 = vld [vmem:[%s0 + $0x90] sm:$0xff]
      %v163 = vld [vmem:[%s0 + $0x98] sm:$0xff]
      %v164 = vld [vmem:[%s0 + $0xa0] sm:$0xff]
      %v165 = vld [vmem:[%s0 + $0xa8] sm:$0xff]
      %v166 = vld [vmem:[%s0 + $0xb0] sm:$0xff]
      %v167 = vld [vmem:[%s0 + $0xb8] sm:$0xff]
      %v168 = vld [vmem:[%s0 + $0xc0] sm:$0xff]
      %v169 = vld [vmem:[%s0 + $0xc8] sm:$0xff]
      %v170 = vld [vmem:[%s0 + $0xd0] sm:$0xff]
      %v171 = vld [vmem:[%s0 + $0xd8] sm:$0xff]
      %v172 = vld [vmem:[%s0 + $0xe0] sm:$0xff]
      %v173 = vld [vmem:[%s0 + $0xe8] sm:$0xff]
      %v174 = vld [vmem:[%s0 + $0xf0] sm:$0xff]
      %v175 = vld [vmem:[%s0 + $0xf8] sm:$0xff]
      %v176 = vld [vmem:[%s0 + $0x100] sm:$0xff]
      %v177 = vld [vmem:[%s0 + $0x108] sm:$0xff]
      %v178 = vld [vmem:[%s0 + $0x110] sm:$0xff]
      %v179 = vld [vmem:[%s0 + $0x118] sm:$0xff]
      %v180 = vld [vmem:[%s0 + $0x120] sm:$0xff]
      %v181 = vld [vmem:[%s0 + $0x128] sm:$0xff]
      %v182 = vld [vmem:[%s0 + $0x130] sm:$0xff]
      %v183 = vld [vmem:[%s0 + $0x138] sm:$0xff]
      %v184 = vld [vmem:[%s0 + $0x140] sm:$0xff]
      %v185 = vld [vmem:[%s0 + $0x148] sm:$0xff]
      %v186 = vld [vmem:[%s0 + $0x150] sm:$0xff]
      %v187 = vld [vmem:[%s0 + $0x158] sm:$0xff]
      %v188 = vld [vmem:[%s0 + $0x160] sm:$0xff]
      %v189 = vld [vmem:[%s0 + $0x168] sm:$0xff]
      %v190 = vld [vmem:[%s0 + $0x170] sm:$0xff]
      %v191 = vld [vmem:[%s0 + $0x178] sm:$0xff]
      %v192 = vld [vmem:[%s0 + $0x180] sm:$0xff]
      %v193 = vld [vmem:[%s0 + $0x188] sm:$0xff]
      %v194 = vld [vmem:[%s0 + $0x190] sm:$0xff]
      %v195 = vld [vmem:[%s0 + $0x198] sm:$0xff]
      %v196 = vld [vmem:[%s0 + $0x1a0] sm:$0xff]
      %v197 = vld [vmem:[%s0 + $0x1a8] sm:$0xff]
      %v198 = vld [vmem:[%s0 + $0x1b0] sm:$0xff]
      %v199 = vld [vmem:[%s0 + $0x1b8] sm:$0xff]
      %v200 = vld [vmem:[%s0 + $0x1c0] sm:$0xff]
      %v201 = vld [vmem:[%s0 + $0x1c8] sm:$0xff]
      %v202 = vld [vmem:[%s0 + $0x1d0] sm:$0xff]
      %v203 = vld [vmem:[%s0 + $0x1d8] sm:$0xff]
      %v204 = vld [vmem:[%s0 + $0x1e0] sm:$0xff]
      %v205 = vld [vmem:[%s0 + $0x1e8] sm:$0xff]
      %v206 = vld [vmem:[%s0 + $0x1f0] sm:$0xff]
      %v207 = vld [vmem:[%s0 + $0x1f8] sm:$0xff]
      %v208 = vld [vmem:[%s138] sm:$0xff]
      %v209 = vld [vmem:[%s138 + $0x8] sm:$0xff]
      %v210 = vld [vmem:[%s138 + $0x10] sm:$0xff]
      %v212 = vunpack.c.l.b16 %v208
      %v213 = vunpack.c.h.b16 %v208
      %v214 = vpack.c.b16 %v212, %v212
      %v215 = vpack.c.b16 %v213, %v213
      %v282 = vunpack.c.l.b16 %v144
      %v283 = vunpack.c.h.b16 %v144
      %v284 = vunpack.c.l.b16 %v145
      %v285 = vunpack.c.h.b16 %v145
      %v286 = vunpack.c.l.b16 %v146
      %v287 = vunpack.c.h.b16 %v146
      %v288 = vunpack.c.l.b16 %v147
      %v289 = vunpack.c.h.b16 %v147
      %v290 = vunpack.c.l.b16 %v148
      %v291 = vunpack.c.h.b16 %v148
      %v292 = vunpack.c.l.b16 %v149
      %v293 = vunpack.c.h.b16 %v149
      %v294 = vunpack.c.l.b16 %v150
      %v295 = vunpack.c.h.b16 %v150
      %v296 = vunpack.c.l.b16 %v151
      %v297 = vunpack.c.h.b16 %v151
      %v298 = vunpack.c.l.b16 %v152
      %v299 = vunpack.c.h.b16 %v152
      %v300 = vunpack.c.l.b16 %v153
      %v301 = vunpack.c.h.b16 %v153
      %v302 = vunpack.c.l.b16 %v154
      %v303 = vunpack.c.h.b16 %v154
      %v304 = vunpack.c.l.b16 %v155
      %v305 = vunpack.c.h.b16 %v155
      %v306 = vunpack.c.l.b16 %v156
      %v307 = vunpack.c.h.b16 %v156
      %v308 = vunpack.c.l.b16 %v157
      %v309 = vunpack.c.h.b16 %v157
      %v310 = vunpack.c.l.b16 %v158
      %v311 = vunpack.c.h.b16 %v158
      %v312 = vunpack.c.l.b16 %v159
      %v313 = vunpack.c.h.b16 %v159
      %v314 = vunpack.c.l.b16 %v160
      %v315 = vunpack.c.h.b16 %v160
      %v316 = vunpack.c.l.b16 %v161
      %v317 = vunpack.c.h.b16 %v161
      %v318 = vunpack.c.l.b16 %v162
      %v319 = vunpack.c.h.b16 %v162
      %v320 = vunpack.c.l.b16 %v163
      %v321 = vunpack.c.h.b16 %v163
      %v322 = vunpack.c.l.b16 %v164
      %v323 = vunpack.c.h.b16 %v164
      %v324 = vunpack.c.l.b16 %v165
      %v325 = vunpack.c.h.b16 %v165
      %v326 = vunpack.c.l.b16 %v166
      %v327 = vunpack.c.h.b16 %v166
      %v328 = vunpack.c.l.b16 %v167
      %v329 = vunpack.c.h.b16 %v167
      %v330 = vunpack.c.l.b16 %v168
      %v331 = vunpack.c.h.b16 %v168
      %v332 = vunpack.c.l.b16 %v169
      %v333 = vunpack.c.h.b16 %v169
      %v334 = vunpack.c.l.b16 %v170
      %v335 = vunpack.c.h.b16 %v170
      %v336 = vunpack.c.l.b16 %v171
      %v337 = vunpack.c.h.b16 %v171
      %v338 = vunpack.c.l.b16 %v172
      %v339 = vunpack.c.h.b16 %v172
      %v340 = vunpack.c.l.b16 %v173
      %v341 = vunpack.c.h.b16 %v173
      %v342 = vunpack.c.l.b16 %v174
      %v343 = vunpack.c.h.b16 %v174
      %v344 = vunpack.c.l.b16 %v175
      %v345 = vunpack.c.h.b16 %v175
      %v346 = vunpack.c.l.b16 %v176
      %v347 = vunpack.c.h.b16 %v176
      %v348 = vunpack.c.l.b16 %v177
      %v349 = vunpack.c.h.b16 %v177
      %v350 = vunpack.c.l.b16 %v178
      %v351 = vunpack.c.h.b16 %v178
      %v352 = vunpack.c.l.b16 %v179
      %v353 = vunpack.c.h.b16 %v179
      %v354 = vunpack.c.l.b16 %v180
      %v355 = vunpack.c.h.b16 %v180
      %v356 = vunpack.c.l.b16 %v181
      %v357 = vunpack.c.h.b16 %v181
      %v358 = vunpack.c.l.b16 %v182
      %v359 = vunpack.c.h.b16 %v182
      %v360 = vunpack.c.l.b16 %v183
      %v361 = vunpack.c.h.b16 %v183
      %v362 = vunpack.c.l.b16 %v184
      %v363 = vunpack.c.h.b16 %v184
      %v364 = vunpack.c.l.b16 %v185
      %v365 = vunpack.c.h.b16 %v185
      %v366 = vunpack.c.l.b16 %v186
      %v367 = vunpack.c.h.b16 %v186
      %v368 = vunpack.c.l.b16 %v187
      %v369 = vunpack.c.h.b16 %v187
      %v370 = vunpack.c.l.b16 %v188
      %v371 = vunpack.c.h.b16 %v188
      %v372 = vunpack.c.l.b16 %v189
      %v373 = vunpack.c.h.b16 %v189
      %v374 = vunpack.c.l.b16 %v190
      %v375 = vunpack.c.h.b16 %v190
      %v376 = vunpack.c.l.b16 %v191
      %v377 = vunpack.c.h.b16 %v191
      %v378 = vunpack.c.l.b16 %v192
      %v379 = vunpack.c.h.b16 %v192
      %v380 = vunpack.c.l.b16 %v193
      %v381 = vunpack.c.h.b16 %v193
      %v382 = vunpack.c.l.b16 %v194
      %v383 = vunpack.c.h.b16 %v194
      %v384 = vunpack.c.l.b16 %v195
      %v385 = vunpack.c.h.b16 %v195
      %v386 = vunpack.c.l.b16 %v196
      %v387 = vunpack.c.h.b16 %v196
      %v388 = vunpack.c.l.b16 %v197
      %v389 = vunpack.c.h.b16 %v197
      %v390 = vunpack.c.l.b16 %v198
      %v391 = vunpack.c.h.b16 %v198
      %v392 = vunpack.c.l.b16 %v199
      %v393 = vunpack.c.h.b16 %v199
      %v394 = vunpack.c.l.b16 %v200
      %v395 = vunpack.c.h.b16 %v200
      %v396 = vunpack.c.l.b16 %v201
      %v397 = vunpack.c.h.b16 %v201
      %v398 = vunpack.c.l.b16 %v202
      %v399 = vunpack.c.h.b16 %v202
      %v400 = vunpack.c.l.b16 %v203
      %v401 = vunpack.c.h.b16 %v203
      %v402 = vunpack.c.l.b16 %v204
      %v403 = vunpack.c.h.b16 %v204
      %v404 = vunpack.c.l.b16 %v205
      %v405 = vunpack.c.h.b16 %v205
      %v406 = vunpack.c.l.b16 %v206
      %v407 = vunpack.c.h.b16 %v206
      %v408 = vunpack.c.l.b16 %v207
      %v409 = vunpack.c.h.b16 %v207
      %v410 = vpack.c.b16 %v286, %v282
      %v411 = vpack.c.b16 %v287, %v283
      %v412 = vpack.c.b16 %v288, %v284
      %v413 = vpack.c.b16 %v289, %v285
      %v414 = vpack.c.b16 %v294, %v290
      %v415 = vpack.c.b16 %v295, %v291
      %v416 = vpack.c.b16 %v296, %v292
      %v417 = vpack.c.b16 %v297, %v293
      %v418 = vpack.c.b16 %v302, %v298
      %v419 = vpack.c.b16 %v303, %v299
      %v420 = vpack.c.b16 %v304, %v300
      %v421 = vpack.c.b16 %v305, %v301
      %v422 = vpack.c.b16 %v310, %v306
      %v423 = vpack.c.b16 %v311, %v307
      %v424 = vpack.c.b16 %v312, %v308
      %v425 = vpack.c.b16 %v313, %v309
      %v426 = vpack.c.b16 %v318, %v314
      %v427 = vpack.c.b16 %v319, %v315
      %v428 = vpack.c.b16 %v320, %v316
      %v429 = vpack.c.b16 %v321, %v317
      %v430 = vpack.c.b16 %v326, %v322
      %v431 = vpack.c.b16 %v327, %v323
      %v432 = vpack.c.b16 %v328, %v324
      %v433 = vpack.c.b16 %v329, %v325
      %v434 = vpack.c.b16 %v334, %v330
      %v435 = vpack.c.b16 %v335, %v331
      %v436 = vpack.c.b16 %v336, %v332
      %v437 = vpack.c.b16 %v337, %v333
      %v438 = vpack.c.b16 %v342, %v338
      %v439 = vpack.c.b16 %v343, %v339
      %v440 = vpack.c.b16 %v344, %v340
      %v441 = vpack.c.b16 %v345, %v341
      %v442 = vpack.c.b16 %v350, %v346
      %v443 = vpack.c.b16 %v351, %v347
      %v444 = vpack.c.b16 %v352, %v348
      %v445 = vpack.c.b16 %v353, %v349
      %v446 = vpack.c.b16 %v358, %v354
      %v447 = vpack.c.b16 %v359, %v355
      %v448 = vpack.c.b16 %v360, %v356
      %v449 = vpack.c.b16 %v361, %v357
      %v450 = vpack.c.b16 %v366, %v362
      %v451 = vpack.c.b16 %v367, %v363
      %v452 = vpack.c.b16 %v368, %v364
      %v453 = vpack.c.b16 %v369, %v365
      %v454 = vpack.c.b16 %v374, %v370
      %v455 = vpack.c.b16 %v375, %v371
      %v456 = vpack.c.b16 %v376, %v372
      %v457 = vpack.c.b16 %v377, %v373
      %v458 = vpack.c.b16 %v382, %v378
      %v459 = vpack.c.b16 %v383, %v379
      %v460 = vpack.c.b16 %v384, %v380
      %v461 = vpack.c.b16 %v385, %v381
      %v462 = vpack.c.b16 %v390, %v386
      %v463 = vpack.c.b16 %v391, %v387
      %v464 = vpack.c.b16 %v392, %v388
      %v465 = vpack.c.b16 %v393, %v389
      %v466 = vpack.c.b16 %v398, %v394
      %v467 = vpack.c.b16 %v399, %v395
      %v468 = vpack.c.b16 %v400, %v396
      %v469 = vpack.c.b16 %v401, %v397
      %v470 = vpack.c.b16 %v406, %v402
      %v471 = vpack.c.b16 %v407, %v403
      %v472 = vpack.c.b16 %v408, %v404
      %v473 = vpack.c.b16 %v409, %v405
      %538 = vmatprep.subr.bf16.mxu0 %v411
      %539 = vmatpush1.bf16.msra.mxu0 %v410
      %540 = vmatprep.subr.bf16.mxu0 %v415
      %541 = vmatpush1.bf16.msra.mxu0 %v414
      %542 = vmatprep.subr.bf16.mxu0 %v419
      %543 = vmatpush1.bf16.msra.mxu0 %v418
      %544 = vmatprep.subr.bf16.mxu0 %v423
      %545 = vmatpush1.bf16.msra.mxu0 %v422
      %546 = vmatprep.subr.bf16.mxu0 %v427
      %547 = vmatpush1.bf16.msra.mxu0 %v426
      %548 = vmatprep.subr.bf16.mxu0 %v431
      %549 = vmatpush1.bf16.msra.mxu0 %v430
      %550 = vmatprep.subr.bf16.mxu0 %v435
      %551 = vmatpush1.bf16.msra.mxu0 %v434
      %552 = vmatprep.subr.bf16.mxu0 %v439
      %553 = vmatpush1.bf16.msra.mxu0 %v438
      %554 = vmatprep.subr.bf16.mxu0 %v443
      %555 = vmatpush1.bf16.msra.mxu0 %v442
      %556 = vmatprep.subr.bf16.mxu0 %v447
      %557 = vmatpush1.bf16.msra.mxu0 %v446
      %558 = vmatprep.subr.bf16.mxu0 %v451
      %559 = vmatpush1.bf16.msra.mxu0 %v450
      %560 = vmatprep.subr.bf16.mxu0 %v455
      %561 = vmatpush1.bf16.msra.mxu0 %v454
      %562 = vmatprep.subr.bf16.mxu0 %v459
      %563 = vmatpush1.bf16.msra.mxu0 %v458
      %564 = vmatprep.subr.bf16.mxu0 %v463
      %565 = vmatpush1.bf16.msra.mxu0 %v462
      %566 = vmatprep.subr.bf16.mxu0 %v467
      %567 = vmatpush1.bf16.msra.mxu0 %v466
      %568 = vmatprep.subr.bf16.mxu0 %v471
      %569 = vmatpush1.bf16.msra.mxu0 %v470
      %570 = vmatprep.mubr.bf16.mxu0 %v215
      %571 = vmatmul.mubr.bf16.gmra.mrb[0].mxu0 %v214
      %v572 = vpop.f32.mrb[0].mxu0
      %v573 = vadd.f32 0.0, %v572
      %v574 = vpop.f32.mrb[0].mxu0
      %v575 = vadd.f32 0.0, %v574
      %v576 = vpop.f32.mrb[0].mxu0
      %v577 = vpop.f32.mrb[0].mxu0
      %578 = vdwg.mxu0
      %579 = vmatprep.subr.bf16.mxu0 %v413
      %580 = vmatpush1.bf16.msra.mxu0 %v412
      %581 = vmatprep.subr.bf16.mxu0 %v417
      %582 = vmatpush1.bf16.msra.mxu0 %v416
      %583 = vmatprep.subr.bf16.mxu0 %v421
      %584 = vmatpush1.bf16.msra.mxu0 %v420
      %585 = vmatprep.subr.bf16.mxu0 %v425
      %586 = vmatpush1.bf16.msra.mxu0 %v424
      %587 = vmatprep.subr.bf16.mxu0 %v429
      %588 = vmatpush1.bf16.msra.mxu0 %v428
      %589 = vmatprep.subr.bf16.mxu0 %v433
      %590 = vmatpush1.bf16.msra.mxu0 %v432
      %591 = vmatprep.subr.bf16.mxu0 %v437
      %592 = vmatpush1.bf16.msra.mxu0 %v436
      %593 = vmatprep.subr.bf16.mxu0 %v441
      %594 = vmatpush1.bf16.msra.mxu0 %v440
      %595 = vmatprep.subr.bf16.mxu0 %v445
      %596 = vmatpush1.bf16.msra.mxu0 %v444
      %597 = vmatprep.subr.bf16.mxu0 %v449
      %598 = vmatpush1.bf16.msra.mxu0 %v448
      %599 = vmatprep.subr.bf16.mxu0 %v453
      %600 = vmatpush1.bf16.msra.mxu0 %v452
      %601 = vmatprep.subr.bf16.mxu0 %v457
      %602 = vmatpush1.bf16.msra.mxu0 %v456
      %603 = vmatprep.subr.bf16.mxu0 %v461
      %604 = vmatpush1.bf16.msra.mxu0 %v460
      %605 = vmatprep.subr.bf16.mxu0 %v465
      %606 = vmatpush1.bf16.msra.mxu0 %v464
      %607 = vmatprep.subr.bf16.mxu0 %v469
      %608 = vmatpush1.bf16.msra.mxu0 %v468
      %609 = vmatprep.subr.bf16.mxu0 %v473
      %610 = vmatpush1.bf16.msra.mxu0 %v472
      %611 = vmatprep.mubr.bf16.mxu0 %v215
      %612 = vmatmul.mubr.bf16.gmra.mrb[0].mxu0 %v214
      %v613 = vpop.f32.mrb[0].mxu0
      %v614 = vadd.f32 0.0, %v613
      %v615 = vpop.f32.mrb[0].mxu0
      %v616 = vadd.f32 0.0, %v615
      %v617 = vpop.f32.mrb[0].mxu0
      %v618 = vpop.f32.mrb[0].mxu0
      %619 = vdwg.mxu0
      %v620 = vmul.f32 %v573, %v573
      %v621 = vmul.f32 %v575, %v575
      %v622 = vmul.f32 %v614, %v614
      %v623 = vmul.f32 %v616, %v616
      %v624 = vadd.f32 %v620, %v622
      %v625 = vadd.f32 %v621, %v623
      %v626 = vrsqrt.pop %v624
      %v627 = vmul.f32 %v624, %v626
      %vm628 = vcmp.eq.f32.partialorder %v624, inf
      %v629 = vsel %vm628, %v624, %v627
      %vm630 = vcmp.eq.f32.partialorder %v624, 0.0
      %v631 = vand.u32 %v624, 2147483648
      %v632 = vsel %vm630, %v631, %v629
      %v633 = vrsqrt.pop %v625
      %v634 = vmul.f32 %v625, %v633
      %vm635 = vcmp.eq.f32.partialorder %v625, inf
      %v636 = vsel %vm635, %v625, %v634
      %vm637 = vcmp.eq.f32.partialorder %v625, 0.0
      %v638 = vand.u32 %v625, 2147483648
      %v639 = vsel %vm637, %v638, %v636
      %v640 = vadd.f32 %v632, 0.0
      %v641 = vadd.f32 %v639, 0.0
      %v643 = vunpack.c.l.b16 %v209
      %v644 = vunpack.c.h.b16 %v209
      %v645 = vpack.c.b16 %v643, %v643
      %v646 = vpack.c.b16 %v644, %v644
      %649 = vmatprep.subr.bf16.mxu0 %v411
      %650 = vmatpush1.bf16.msra.mxu0 %v410
      %651 = vmatprep.subr.bf16.mxu0 %v415
      %652 = vmatpush1.bf16.msra.mxu0 %v414
      %653 = vmatprep.subr.bf16.mxu0 %v419
      %654 = vmatpush1.bf16.msra.mxu0 %v418
      %655 = vmatprep.subr.bf16.mxu0 %v423
      %656 = vmatpush1.bf16.msra.mxu0 %v422
      %657 = vmatprep.subr.bf16.mxu0 %v427
      %658 = vmatpush1.bf16.msra.mxu0 %v426
      %659 = vmatprep.subr.bf16.mxu0 %v431
      %660 = vmatpush1.bf16.msra.mxu0 %v430
      %661 = vmatprep.subr.bf16.mxu0 %v435
      %662 = vmatpush1.bf16.msra.mxu0 %v434
      %663 = vmatprep.subr.bf16.mxu0 %v439
      %664 = vmatpush1.bf16.msra.mxu0 %v438
      %665 = vmatprep.subr.bf16.mxu0 %v443
      %666 = vmatpush1.bf16.msra.mxu0 %v442
      %667 = vmatprep.subr.bf16.mxu0 %v447
      %668 = vmatpush1.bf16.msra.mxu0 %v446
      %669 = vmatprep.subr.bf16.mxu0 %v451
      %670 = vmatpush1.bf16.msra.mxu0 %v450
      %671 = vmatprep.subr.bf16.mxu0 %v455
      %672 = vmatpush1.bf16.msra.mxu0 %v454
      %673 = vmatprep.subr.bf16.mxu0 %v459
      %674 = vmatpush1.bf16.msra.mxu0 %v458
      %675 = vmatprep.subr.bf16.mxu0 %v463
      %676 = vmatpush1.bf16.msra.mxu0 %v462
      %677 = vmatprep.subr.bf16.mxu0 %v467
      %678 = vmatpush1.bf16.msra.mxu0 %v466
      %679 = vmatprep.subr.bf16.mxu0 %v471
      %680 = vmatpush1.bf16.msra.mxu0 %v470
      %681 = vmatprep.mubr.bf16.mxu0 %v646
      %682 = vmatmul.mubr.bf16.gmra.mrb[0].mxu0 %v645
      %v683 = vpop.f32.mrb[0].mxu0
      %v684 = vadd.f32 0.0, %v683
      %v685 = vpop.f32.mrb[0].mxu0
      %v686 = vadd.f32 0.0, %v685
      %v687 = vpop.f32.mrb[0].mxu0
      %v688 = vpop.f32.mrb[0].mxu0
      %689 = vdwg.mxu0
      %690 = vmatprep.subr.bf16.mxu0 %v413
      %691 = vmatpush1.bf16.msra.mxu0 %v412
      %692 = vmatprep.subr.bf16.mxu0 %v417
      %693 = vmatpush1.bf16.msra.mxu0 %v416
      %694 = vmatprep.subr.bf16.mxu0 %v421
      %695 = vmatpush1.bf16.msra.mxu0 %v420
      %696 = vmatprep.subr.bf16.mxu0 %v425
      %697 = vmatpush1.bf16.msra.mxu0 %v424
      %698 = vmatprep.subr.bf16.mxu0 %v429
      %699 = vmatpush1.bf16.msra.mxu0 %v428
      %700 = vmatprep.subr.bf16.mxu0 %v433
      %701 = vmatpush1.bf16.msra.mxu0 %v432
      %702 = vmatprep.subr.bf16.mxu0 %v437
      %703 = vmatpush1.bf16.msra.mxu0 %v436
      %704 = vmatprep.subr.bf16.mxu0 %v441
      %705 = vmatpush1.bf16.msra.mxu0 %v440
      %706 = vmatprep.subr.bf16.mxu0 %v445
      %707 = vmatpush1.bf16.msra.mxu0 %v444
      %708 = vmatprep.subr.bf16.mxu0 %v449
      %709 = vmatpush1.bf16.msra.mxu0 %v448
      %710 = vmatprep.subr.bf16.mxu0 %v453
      %711 = vmatpush1.bf16.msra.mxu0 %v452
      %712 = vmatprep.subr.bf16.mxu0 %v457
      %713 = vmatpush1.bf16.msra.mxu0 %v456
      %714 = vmatprep.subr.bf16.mxu0 %v461
      %715 = vmatpush1.bf16.msra.mxu0 %v460
      %716 = vmatprep.subr.bf16.mxu0 %v465
      %717 = vmatpush1.bf16.msra.mxu0 %v464
      %718 = vmatprep.subr.bf16.mxu0 %v469
      %719 = vmatpush1.bf16.msra.mxu0 %v468
      %720 = vmatprep.subr.bf16.mxu0 %v473
      %721 = vmatpush1.bf16.msra.mxu0 %v472
      %722 = vmatprep.mubr.bf16.mxu0 %v646
      %723 = vmatmul.mubr.bf16.gmra.mrb[0].mxu0 %v645
      %v724 = vpop.f32.mrb[0].mxu0
      %v725 = vadd.f32 0.0, %v724
      %v726 = vpop.f32.mrb[0].mxu0
      %v727 = vadd.f32 0.0, %v726
      %v728 = vpop.f32.mrb[0].mxu0
      %v729 = vpop.f32.mrb[0].mxu0
      %730 = vdwg.mxu0
      %v731 = vmul.f32 %v684, %v684
      %v732 = vmul.f32 %v686, %v686
      %v733 = vmul.f32 %v725, %v725
      %v734 = vmul.f32 %v727, %v727
      %v735 = vadd.f32 %v731, %v733
      %v736 = vadd.f32 %v732, %v734
      %v737 = vrsqrt.pop %v735
      %v738 = vmul.f32 %v735, %v737
      %vm739 = vcmp.eq.f32.partialorder %v735, inf
      %v740 = vsel %vm739, %v735, %v738
      %vm741 = vcmp.eq.f32.partialorder %v735, 0.0
      %v742 = vand.u32 %v735, 2147483648
      %v743 = vsel %vm741, %v742, %v740
      %v744 = vrsqrt.pop %v736
      %v745 = vmul.f32 %v736, %v744
      %vm746 = vcmp.eq.f32.partialorder %v736, inf
      %v747 = vsel %vm746, %v736, %v745
      %vm748 = vcmp.eq.f32.partialorder %v736, 0.0
      %v749 = vand.u32 %v736, 2147483648
      %v750 = vsel %vm748, %v749, %v747
      %v751 = vadd.f32 %v640, %v743
      %v752 = vadd.f32 %v641, %v750
      %v754 = vunpack.c.l.b16 %v210
      %v755 = vunpack.c.h.b16 %v210
      %v756 = vpack.c.b16 %v754, %v754
      %v757 = vpack.c.b16 %v755, %v755
      %760 = vmatprep.subr.bf16.mxu0 %v411
      %761 = vmatpush1.bf16.msra.mxu0 %v410
      %762 = vmatprep.subr.bf16.mxu0 %v415
      %763 = vmatpush1.bf16.msra.mxu0 %v414
      %764 = vmatprep.subr.bf16.mxu0 %v419
      %765 = vmatpush1.bf16.msra.mxu0 %v418
      %766 = vmatprep.subr.bf16.mxu0 %v423
      %767 = vmatpush1.bf16.msra.mxu0 %v422
      %768 = vmatprep.subr.bf16.mxu0 %v427
      %769 = vmatpush1.bf16.msra.mxu0 %v426
      %770 = vmatprep.subr.bf16.mxu0 %v431
      %771 = vmatpush1.bf16.msra.mxu0 %v430
      %772 = vmatprep.subr.bf16.mxu0 %v435
      %773 = vmatpush1.bf16.msra.mxu0 %v434
      %774 = vmatprep.subr.bf16.mxu0 %v439
      %775 = vmatpush1.bf16.msra.mxu0 %v438
      %776 = vmatprep.subr.bf16.mxu0 %v443
      %777 = vmatpush1.bf16.msra.mxu0 %v442
      %778 = vmatprep.subr.bf16.mxu0 %v447
      %779 = vmatpush1.bf16.msra.mxu0 %v446
      %780 = vmatprep.subr.bf16.mxu0 %v451
      %781 = vmatpush1.bf16.msra.mxu0 %v450
      %782 = vmatprep.subr.bf16.mxu0 %v455
      %783 = vmatpush1.bf16.msra.mxu0 %v454
      %784 = vmatprep.subr.bf16.mxu0 %v459
      %785 = vmatpush1.bf16.msra.mxu0 %v458
      %786 = vmatprep.subr.bf16.mxu0 %v463
      %787 = vmatpush1.bf16.msra.mxu0 %v462
      %788 = vmatprep.subr.bf16.mxu0 %v467
      %789 = vmatpush1.bf16.msra.mxu0 %v466
      %790 = vmatprep.subr.bf16.mxu0 %v471
      %791 = vmatpush1.bf16.msra.mxu0 %v470
      %792 = vmatprep.mubr.bf16.mxu0 %v757
      %793 = vmatmul.mubr.bf16.gmra.mrb[0].mxu0 %v756
      %v794 = vpop.f32.mrb[0].mxu0
      %v795 = vadd.f32 0.0, %v794
      %v796 = vpop.f32.mrb[0].mxu0
      %v797 = vadd.f32 0.0, %v796
      %v798 = vpop.f32.mrb[0].mxu0
      %v799 = vpop.f32.mrb[0].mxu0
      %800 = vdwg.mxu0
      %801 = vmatprep.subr.bf16.mxu0 %v413
      %802 = vmatpush1.bf16.msra.mxu0 %v412
      %803 = vmatprep.subr.bf16.mxu0 %v417
      %804 = vmatpush1.bf16.msra.mxu0 %v416
      %805 = vmatprep.subr.bf16.mxu0 %v421
      %806 = vmatpush1.bf16.msra.mxu0 %v420
      %807 = vmatprep.subr.bf16.mxu0 %v425
      %808 = vmatpush1.bf16.msra.mxu0 %v424
      %809 = vmatprep.subr.bf16.mxu0 %v429
      %810 = vmatpush1.bf16.msra.mxu0 %v428
      %811 = vmatprep.subr.bf16.mxu0 %v433
      %812 = vmatpush1.bf16.msra.mxu0 %v432
      %813 = vmatprep.subr.bf16.mxu0 %v437
      %814 = vmatpush1.bf16.msra.mxu0 %v436
      %815 = vmatprep.subr.bf16.mxu0 %v441
      %816 = vmatpush1.bf16.msra.mxu0 %v440
      %817 = vmatprep.subr.bf16.mxu0 %v445
      %818 = vmatpush1.bf16.msra.mxu0 %v444
      %819 = vmatprep.subr.bf16.mxu0 %v449
      %820 = vmatpush1.bf16.msra.mxu0 %v448
      %821 = vmatprep.subr.bf16.mxu0 %v453
      %822 = vmatpush1.bf16.msra.mxu0 %v452
      %823 = vmatprep.subr.bf16.mxu0 %v457
      %824 = vmatpush1.bf16.msra.mxu0 %v456
      %825 = vmatprep.subr.bf16.mxu0 %v461
      %826 = vmatpush1.bf16.msra.mxu0 %v460
      %827 = vmatprep.subr.bf16.mxu0 %v465
      %828 = vmatpush1.bf16.msra.mxu0 %v464
      %829 = vmatprep.subr.bf16.mxu0 %v469
      %830 = vmatpush1.bf16.msra.mxu0 %v468
      %831 = vmatprep.subr.bf16.mxu0 %v473
      %832 = vmatpush1.bf16.msra.mxu0 %v472
      %833 = vmatprep.mubr.bf16.mxu0 %v757
      %834 = vmatmul.mubr.bf16.gmra.mrb[0].mxu0 %v756
      %v835 = vpop.f32.mrb[0].mxu0
      %v836 = vadd.f32 0.0, %v835
      %v837 = vpop.f32.mrb[0].mxu0
      %v838 = vadd.f32 0.0, %v837
      %v839 = vpop.f32.mrb[0].mxu0
      %v840 = vpop.f32.mrb[0].mxu0
      %841 = vdwg.mxu0
      %v842 = vmul.f32 %v795, %v795
      %v843 = vmul.f32 %v797, %v797
      %v844 = vmul.f32 %v836, %v836
      %v845 = vmul.f32 %v838, %v838
      %v846 = vadd.f32 %v842, %v844
      %v847 = vadd.f32 %v843, %v845
      %v848 = vrsqrt.pop %v846
      %v849 = vmul.f32 %v846, %v848
      %vm850 = vcmp.eq.f32.partialorder %v846, inf
      %v851 = vsel %vm850, %v846, %v849
      %vm852 = vcmp.eq.f32.partialorder %v846, 0.0
      %v853 = vand.u32 %v846, 2147483648
      %v854 = vsel %vm852, %v853, %v851
      %v855 = vrsqrt.pop %v847
      %v856 = vmul.f32 %v847, %v855
      %vm857 = vcmp.eq.f32.partialorder %v847, inf
      %v858 = vsel %vm857, %v847, %v856
      %vm859 = vcmp.eq.f32.partialorder %v847, 0.0
      %v860 = vand.u32 %v847, 2147483648
      %v861 = vsel %vm859, %v860, %v858
      %v862 = vadd.f32 %v751, %v854
      %v863 = vadd.f32 %v752, %v861
      %vm864 = vcmp.ge.f32.partialorder %v862, 0.1
      %vm865 = vcmp.ge.f32.partialorder %v863, 0.1
      %v866 = vmul.f32 %v862, 0.08838607
      %v867 = vmul.f32 %v863, 0.08838607
      %v868 = vmin.f32 %v866, 1.0
      %v869 = vmin.f32 %v867, 1.0
      %v870 = vsel %vm864, %v868, 0.0
      %v871 = vsel %vm865, %v869, 0.0
      %872 = vst [vmem:[%s143] sm:$0xff] %v870
      %873 = vst [vmem:[%s143 + $0x8] sm:$0xff] %v871
      %p874 = scmp.lt.s32.totalorder %s13, 1
      %s875 = scalar_select %p874, %s13, 1
      %s876 = smul.addr %s875, 2
      %s877 = smul.addr %s876, 8
      %s878 = scalar_lea.vmem %s2, %s877
      // Predicated region
      $region29: #{get_adaptive_smooth_tar.1} parent=27 // pred_check
        %p879 = pneg %p78
      $region30: #{get_adaptive_smooth_tar.1} parent=27 // pred_check_branch
        %881 = sbr.rel (%p879) target = $region32
      $region31: #{get_adaptive_smooth_tar.1} parent=27 // pred_region
        _
      $region32: #{get_adaptive_smooth_tar.1} parent=27 // pred_fallthru
        _
    $region28: #{get_adaptive_smooth_tar.1} parent=5 // pred_fallthru
      _
    %p882 = scmp.le.s32.totalorder 2, %s8
    // Predicated region
    $region33: #{get_adaptive_smooth_tar.1} parent=5 // pred_check
      %p883 = pneg %p882
    $region34: #{get_adaptive_smooth_tar.1} parent=5 // pred_check_branch
      %885 = sbr.rel (%p883) target = $region36
    $region35: #{get_adaptive_smooth_tar.1} parent=5 // pred_region
      %s886 = ssub.s32 %s8, 2
      // Predicated region
      $region37: #{get_adaptive_smooth_tar.1} parent=35 // pred_check
        %p887 = pneg %p84
      $region38: #{get_adaptive_smooth_tar.1} parent=35 // pred_check_branch
        %889 = sbr.rel (%p887) target = $region40
      $region39: #{get_adaptive_smooth_tar.1} parent=35 // pred_region
        %p890 = scmp.lt.s32.totalorder %s14, 1
        %s891 = scalar_select %p890, %s14, 1
        %s892 = smul.addr %s891, 2
        %s893 = smul.addr %s892, 8
        %s894 = scalar_lea.vmem %s2, %s893
      $region40: #{get_adaptive_smooth_tar.1} parent=35 // pred_fallthru
        _
    $region36: #{get_adaptive_smooth_tar.1} parent=5 // pred_fallthru
      _
  $region6: #{get_adaptive_smooth_tar.1} parent=0 // loop_footer
    %s12 = sadd.s32 1, %s8
  $region7: #{get_adaptive_smooth_tar.1} parent=0 // loop_footer_branch
    %7 = sbr.rel target = $region3
  $region8: #{get_adaptive_smooth_tar.1} parent=0 // loop_exit
    _

</llo_original>
